<compile_context>
chip_gen: v7x
topology: tpu7x:2x2x1
jax: 0.10.0
libtpu: 0.0.40
codegen_flags: <defaults>
</compile_context>

<pallas_src>
import functools

import jax
import jax.numpy as jnp
from jax import lax
from jax.experimental import pallas as pl
from jax.experimental.pallas import tpu as pltpu

LANES = 128
SUBLANES = 8


def _round_up(x: int, m: int) -> int:
    return ((x + m - 1) // m) * m


def _generation_config():
    """Returns (max_tile_rows, vmem_cap_bytes) keyed off the TPU generation."""
    try:
        kind = jax.devices()[0].device_kind.lower()
    except Exception:  # pragma: no cover - defensive; fall back to safe config
        kind = ""
    if "v7" in kind:
        # v7x: only 64 MiB VMEM/TC but ~3.2 TB/s HBM/TC.  Allow 16384-row
        # tiles (they fit for <=2-byte dtypes); the budget check below
        # auto-shrinks f32 back to 8192 so we never trip the 48 MiB cap.
        return 16384, 48 << 20
    if "v6" in kind:
        # v6e: 128 MiB physical VMEM (32 MiB scoped default); 16384-row tiles
        # are a small (~1%) win over 8192 and fit comfortably under 64 MiB.
        return 16384, 64 << 20
    # v5e / other: 8192-row tiles are already fully amortized (~10 us of DMA
    # per step at ~820 GB/s); the cap just needs to clear the 16 MiB default.
    return 8192, 40 << 20


def _vmem_budget(tile_rows: int, itemsize_o: int, itemsize_t: int) -> int:
    """Pipeline buffers + in-kernel f32 temporaries + output/misc slack."""
    elems = tile_rows * LANES
    pipeline = 2 * elems * (itemsize_o + itemsize_t)   # 2 bufs per input
    temps = 3 * elems * 4                              # d, |d|, |d|^2+|d| (f32)
    return pipeline + temps + (1 << 20)                # out double-buf + misc


def _partial_kernel(o_ref, t_ref, part_ref, *, tile_rows, needs_mask,
                    rows_in_last):
    # d in f32 regardless of input dtype.
    d = o_ref[...].astype(jnp.float32) - t_ref[...].astype(jnp.float32)

    def _fold_and_store(x):
        a = jnp.abs(x)
        v = a * a + a  # |d|^2 + |d|  (fused MSE + MAE numerator)
        # Fold to one (8, 128) vreg-shaped partial with pure VPU adds;
        # cross-lane reduce is deferred to the tiny JAX epilogue.
        part_ref[0] = jnp.sum(
            v.reshape(tile_rows // SUBLANES, SUBLANES, LANES), axis=0)

    if not needs_mask:
        _fold_and_store(d)
    else:
        last = pl.num_programs(0) - 1

        @pl.when(pl.program_id(0) != last)
        def _():
            _fold_and_store(d)

        @pl.when(pl.program_id(0) == last)
        def _():
            row_ids = lax.broadcasted_iota(jnp.int32, (tile_rows, LANES), 0)
            # Mask BEFORE abs/square so unspecified OOB data (incl. NaN/Inf)
            # cannot leak into the sum.
            _fold_and_store(jnp.where(row_ids < rows_in_last, d, 0.0))


def combined_mse_mae(output: jax.Array, target: jax.Array,
                     *, _max_tile_rows: int | None = None) -> jax.Array:
    """0.5 * MSE + 0.5 * MAE over all elements (reduction='mean')."""
    assert output.shape == target.shape, "output/target shapes must match"
    n = output.size

    flat_o = output.reshape(-1)
    flat_t = target.reshape(-1)
    n_main = (n // LANES) * LANES
    tail = n - n_main

    # <128-element lane tail: handled in the JAX epilogue instead of padding
    # (and copying) both full arrays in HBM.
    if tail:
        d_tail = (flat_o[n_main:].astype(jnp.float32)
                  - flat_t[n_main:].astype(jnp.float32))
        a_tail = jnp.abs(d_tail)
        tail_sum = jnp.sum(a_tail * a_tail + a_tail)
    else:
        tail_sum = jnp.float32(0.0)

    if n_main == 0:
        # Fewer than 128 elements total: nothing for the kernel to do.
        return 0.5 * tail_sum / n

    if tail:
        # TODO(synk): this prefix slice may still materialize a copy of the
        # main slab through XLA; a fully in-kernel ragged-lane-tail path would
        # make the numel % 128 != 0 case zero-copy as well.
        flat_o = flat_o[:n_main]
        flat_t = flat_t[:n_main]

    rows = n_main // LANES
    o2d = flat_o.reshape(rows, LANES)
    t2d = flat_t.reshape(rows, LANES)

    itemsize_o = jnp.dtype(o2d.dtype).itemsize
    itemsize_t = jnp.dtype(t2d.dtype).itemsize
    # Packed-sublane alignment for the narrowest dtype: 8 (f32), 16 (bf16),
    # 32 (int8/fp8).  Keeps narrow-dtype blocks on native packed tiling.
    row_align = SUBLANES * max(1, 4 // min(itemsize_o, itemsize_t))

    max_tile_rows, vmem_cap = _generation_config()
    if _max_tile_rows is not None:
        max_tile_rows = int(_max_tile_rows)

    # Tile rows: as big as allowed, aligned, auto-shrunk until the VMEM budget
    # (pipeline buffers + f32 temporaries) fits under the per-generation cap.
    tile_rows = min(max_tile_rows, _round_up(rows, row_align))
    while (tile_rows > row_align
           and _vmem_budget(tile_rows, itemsize_o, itemsize_t) > vmem_cap):
        tile_rows = max(row_align, _round_up(tile_rows // 2, row_align))

    num_blocks = pl.cdiv(rows, tile_rows)
    needs_mask = (rows % tile_rows) != 0
    rows_in_last = rows - (num_blocks - 1) * tile_rows

    kernel = functools.partial(
        _partial_kernel, tile_rows=tile_rows, needs_mask=needs_mask,
        rows_in_last=rows_in_last)

    budget = _vmem_budget(tile_rows, itemsize_o, itemsize_t)
    # Never clamp below what the tile needs; stay under the generation cap.
    vmem_limit = int(min(vmem_cap, max(budget, 32 << 20)))

    partials = pl.pallas_call(
        kernel,
        out_shape=jax.ShapeDtypeStruct((num_blocks, SUBLANES, LANES),
                                       jnp.float32),
        grid_spec=pl.GridSpec(
            grid=(num_blocks,),
            in_specs=[
                pl.BlockSpec((tile_rows, LANES), lambda i: (i, 0)),
                pl.BlockSpec((tile_rows, LANES), lambda i: (i, 0)),
            ],
            out_specs=pl.BlockSpec((1, SUBLANES, LANES), lambda i: (i, 0, 0)),
        ),
        compiler_params=pltpu.CompilerParams(
            # Independent per-block partials -> grid axis is parallel.
            # TODO(synk): on v7x, confirm via xprof that this single parallel
            # axis shards across both TensorCores; if not, add a leading
            # num_cores axis with pltpu.CORE_PARALLEL and split rows per core.
            dimension_semantics=("parallel",),
            vmem_limit_bytes=vmem_limit,
        ),
    )(o2d, t2d)

    # Tiny epilogue: cross-block / cross-lane reduce + combined 0.5/n scaling.
    # All-f32 accumulation; ~1e-4 relative drift only appears at n >= 1e8-1e9,
    # which is acceptable for a loss value.
    total = jnp.sum(partials) + tail_sum
    return 0.5 * total / n


def _reference(output, target):
    d = output.astype(jnp.float32) - target.astype(jnp.float32)
    return 0.5 * jnp.mean(d * d) + 0.5 * jnp.mean(jnp.abs(d))


if __name__ == "__main__":
    key = jax.random.PRNGKey(0)
    k1, k2, k3, k4, k5, k6 = jax.random.split(key, 6)

    # Case 1: NCHW tensor (what the PyTorch module typically sees);
    # numel % 128 == 0 -> fully zero-copy lane-dense path.
    o1 = jax.random.normal(k1, (2, 4, 16, 16), dtype=jnp.float32)
    t1 = jax.random.normal(k2, (2, 4, 16, 16), dtype=jnp.float32)
    l1 = jax.block_until_ready(combined_mse_mae(o1, t1))
    r1 = jax.block_until_ready(_reference(o1, t1))
    assert jnp.allclose(l1, r1, rtol=1e-5, atol=1e-6), (l1, r1)

    # Case 2: numel % 128 != 0 -> exercises the JAX-epilogue lane tail
    # (no full-array pad/copy).
    o2 = jax.random.normal(k3, (129, 16), dtype=jnp.float32)
    t2 = jax.random.normal(k4, (129, 16), dtype=jnp.float32)
    l2 = jax.block_until_ready(combined_mse_mae(o2, t2))
    r2 = jax.block_until_ready(_reference(o2, t2))
    assert jnp.allclose(l2, r2, rtol=1e-5, atol=1e-6), (l2, r2)

    # Case 3: rows % tile_rows != 0 -> exercises the pl.when-gated ragged
    # last-block mask (small tile override keeps shapes tiny).
    o3 = jax.random.normal(k5, (40, 128), dtype=jnp.float32)
    t3 = jax.random.normal(k6, (40, 128), dtype=jnp.float32)
    l3 = jax.block_until_ready(combined_mse_mae(o3, t3, _max_tile_rows=32))
    r3 = jax.block_until_ready(_reference(o3, t3))
    assert jnp.allclose(l3, r3, rtol=1e-5, atol=1e-6), (l3, r3)

    print("KERNEL_OK")
</pallas_src>

<mosaic_0001>
module attributes {stable_mosaic.version = 11 : i64} {
  func.func @_partial_kernel(%arg0: i32, %arg1: memref<16x128xf32, #tpu.memory_space<vmem>>, %arg2: memref<16x128xf32, #tpu.memory_space<vmem>>, %arg3: memref<1x8x128xf32, #tpu.memory_space<vmem>>) attributes {dimension_semantics = [#tpu.dimension_semantics<parallel>], iteration_bounds = array<i64: 1>, scalar_prefetch = 0 : i64, scratch_operands = 0 : i64, tpu.core_type = #tpu.core_type<tc>, window_params = [{transform_indices = @transform_0, window_bounds = array<i64: 16, 128>}, {transform_indices = @transform_1, window_bounds = array<i64: 16, 128>}, {transform_indices = @transform_2, window_bounds = array<i64: 1, 8, 128>}]} {
    %c0 = arith.constant 0 : index
    %c0_0 = arith.constant 0 : index
    %0 = vector.load %arg1[%c0, %c0_0] : memref<16x128xf32, #tpu.memory_space<vmem>>, vector<16x128xf32>
    %c0_1 = arith.constant 0 : index
    %c0_2 = arith.constant 0 : index
    %1 = vector.load %arg2[%c0_1, %c0_2] : memref<16x128xf32, #tpu.memory_space<vmem>>, vector<16x128xf32>
    %2 = arith.subf %0, %1 : vector<16x128xf32>
    %3 = math.absf %2 : vector<16x128xf32>
    %4 = arith.mulf %3, %3 : vector<16x128xf32>
    %5 = arith.addf %4, %3 : vector<16x128xf32>
    %6 = vector.shape_cast %5 : vector<16x128xf32> to vector<2x8x128xf32>
    %cst = arith.constant dense<0.000000e+00> : vector<8x128xf32>
    %7 = vector.multi_reduction <add>, %6, %cst [0] : vector<2x8x128xf32> to vector<8x128xf32>
    %c0_3 = arith.constant 0 : index
    %c0_4 = arith.constant 0 : index
    %c0_5 = arith.constant 0 : index
    %8 = vector.load %arg3[%c0_3, %c0_4, %c0_5] : memref<1x8x128xf32, #tpu.memory_space<vmem>>, vector<1x8x128xf32>
    %9 = vector.shape_cast %8 : vector<1x8x128xf32> to vector<8x128xf32>
    %10 = vector.shape_cast %7 : vector<8x128xf32> to vector<1x8x128xf32>
    tpu.vector_store %arg3[%c0_3, %c0_4, %c0_5], %10 {strides = array<i32>} : memref<1x8x128xf32, #tpu.memory_space<vmem>>, vector<1x8x128xf32>,
    return
  }
  func.func @transform_0(%arg0: i32) -> (i32, i32) {
    %c0_i32 = arith.constant 0 : i32
    %c0_i32_0 = arith.constant 0 : i32
    return %arg0, %c0_i32 : i32, i32
  }
  func.func @transform_1(%arg0: i32) -> (i32, i32) {
    %c0_i32 = arith.constant 0 : i32
    %c0_i32_0 = arith.constant 0 : i32
    return %arg0, %c0_i32 : i32, i32
  }
  func.func @transform_2(%arg0: i32) -> (i32, i32, i32) {
    %c0_i32 = arith.constant 0 : i32
    %c0_i32_0 = arith.constant 0 : i32
    %c0_i32_1 = arith.constant 0 : i32
    return %arg0, %c0_i32, %c0_i32_0 : i32, i32, i32
  }
}

</mosaic_0001>

<llo_original>
// kernel: tpu_custom_call.1
$region0: #{tpu_custom_call.1}
  #allocation0 [shape = 'u32[]', space=smem, size = 0x4, offset = 0x4, fixed_abs, tag = 'smem constant byte address 0x4 - core index']
  #allocation1 [shape = 'u32[144,128]{1,0:T(1,128)}', space=vmem, size = 0x12000, scoped, tag = 'internal scratch']
  %s0 = inlined_call_operand.hbm [shape: f32[16,128], index: 0, kind: input, shape index: {}]
  %s1 = inlined_call_operand.hbm [shape: f32[16,128], index: 1, kind: input, shape index: {}]
  %s2 = inlined_call_operand.hbm [shape: f32[1,8,128], index: 2, kind: output, shape index: {}]
  %s3 = sld [smem:[#allocation0]]
  $region26: #{tpu_custom_call.1} parent=0
    _
  %s5 = ssub.s32 1, %s3
  %s6 = scalar_select 0, %s5, %s3
  $region1: #{tpu_custom_call.1} parent=0
    #allocation2 [shape = 'u8[8192]{0}', space=vmem, size = 0x2000, scoped, tag = 'input window, operand 0, single buffered']
    #allocation3 [shape = 's32[1]{0}', space=sflag, size = 0x4, scoped, tag = 'scoped memory for tpu_custom_call.1']
    #allocation4 [shape = 's32[1]{0}', space=sflag, size = 0x4, scoped, tag = 'scoped memory for tpu_custom_call.1']
    #allocation5 [shape = 'u8[8192]{0}', space=vmem, size = 0x2000, scoped, tag = 'input window, operand 1, single buffered']
    #allocation6 [shape = 's32[1]{0}', space=sflag, size = 0x4, scoped, tag = 'scoped memory for tpu_custom_call.1']
    #allocation7 [shape = 'u8[4096]{0}', space=vmem, size = 0x1000, scoped, tag = 'output window, operand 0, single buffered']
    %7 = vsyncpa [#allocation3], 0
    %8 = vsyncpa [#allocation6], 0
    %9 = vsyncpa [#allocation4], 0
    // Predicated region
    $region2: #{tpu_custom_call.1} parent=1 // pred_check
      _
    $region3: #{tpu_custom_call.1} parent=1 // pred_check_branch
      %11 = sbr.rel (0) target = $region5
    $region4: #{tpu_custom_call.1} parent=1 // pred_region
      %s13 = ssub.s32 256, 256
      %14 = vsyncadd [#allocation3], %s13
      %s15 = sshll.u32 [#allocation2], 4
      %s16 = int_to_ptr.vmem [resolvable:$true] %s15
      %21 = dma.hbm_to_vmem [thread:$0]  %s0, 256, %s16, [#allocation3], 128, 128, 8
    $region5: #{tpu_custom_call.1} parent=1 // pred_fallthru
      _
    // Predicated region
    $region6: #{tpu_custom_call.1} parent=1 // pred_check
      _
    $region7: #{tpu_custom_call.1} parent=1 // pred_check_branch
      %23 = sbr.rel (0) target = $region9
    $region8: #{tpu_custom_call.1} parent=1 // pred_region
      %s25 = ssub.s32 256, 256
      %26 = vsyncadd [#allocation6], %s25
      %s27 = sshll.u32 [#allocation5], 4
      %s28 = int_to_ptr.vmem [resolvable:$true] %s27
      %33 = dma.hbm_to_vmem [thread:$0]  %s1, 256, %s28, [#allocation6], 128, 128, 8
    $region9: #{tpu_custom_call.1} parent=1 // pred_fallthru
      _
    // Predicated region
    $region10: #{tpu_custom_call.1} parent=1 // pred_check
      _
    $region11: #{tpu_custom_call.1} parent=1 // pred_check_branch
      %35 = sbr.rel (0) target = $region13
    $region12: #{tpu_custom_call.1} parent=1 // pred_region
      %36 = dma.done [#allocation3], 256
    $region13: #{tpu_custom_call.1} parent=1 // pred_fallthru
      _
    // Predicated region
    $region14: #{tpu_custom_call.1} parent=1 // pred_check
      _
    $region15: #{tpu_custom_call.1} parent=1 // pred_check_branch
      %38 = sbr.rel (0) target = $region17
    $region16: #{tpu_custom_call.1} parent=1 // pred_region
      %39 = dma.done [#allocation6], 256
    $region17: #{tpu_custom_call.1} parent=1 // pred_fallthru
      _
    %v40 = vld [vmem:[#allocation2] sm:$0xff]
    %v41 = vld [vmem:[#allocation2 + $0x8] sm:$0xff]
    %v42 = vld [vmem:[#allocation5] sm:$0xff]
    %v43 = vld [vmem:[#allocation5 + $0x8] sm:$0xff]
    %v44 = vsub.f32 %v40, %v42
    %v45 = vsub.f32 %v41, %v43
    %v46 = vand.u32 2147483647, %v44
    %v47 = vand.u32 2147483647, %v45
    %v48 = vmul.f32 %v46, %v46
    %v49 = vmul.f32 %v47, %v47
    %v50 = vadd.f32 %v48, %v46
    %v51 = vadd.f32 %v49, %v47
    %v52 = vadd.f32 %v50, %v51
    %53 = vst [vmem:[#allocation7] sm:$0xff] %v52
    // Predicated region
    $region18: #{tpu_custom_call.1} parent=1 // pred_check
      _
    $region19: #{tpu_custom_call.1} parent=1 // pred_check_branch
      %55 = sbr.rel (0) target = $region21
    $region20: #{tpu_custom_call.1} parent=1 // pred_region
      %s57 = ssub.s32 128, 128
      %58 = vsyncadd [#allocation4], %s57
      %s60 = sshll.u32 [#allocation7], 4
      %s61 = int_to_ptr.vmem [resolvable:$true] %s60
      %63 = dma.vmem_to_hbm [thread:$0]  %s61, 128, %s2, [#allocation4]
    $region21: #{tpu_custom_call.1} parent=1 // pred_fallthru
      _
    // Predicated region
    $region22: #{tpu_custom_call.1} parent=1 // pred_check
      _
    $region23: #{tpu_custom_call.1} parent=1 // pred_check_branch
      %65 = sbr.rel (0) target = $region25
    $region24: #{tpu_custom_call.1} parent=1 // pred_region
      %66 = dma.done [#allocation4], 128
    $region25: #{tpu_custom_call.1} parent=1 // pred_fallthru
      _
    %67 = vsyncpa [#allocation3], 1
    %68 = vsyncpa [#allocation6], 1
    %69 = vsyncpa [#allocation4], 1

</llo_original>
